<compile_context>
chip_gen: v7x
topology: tpu7x:2x2x1
jax: 0.10.0
libtpu: 0.0.40
codegen_flags: <defaults>
</compile_context>

<pallas_src>
import math
from functools import partial

import jax
import jax.numpy as jnp
from jax.experimental import pallas as pl
from jax.experimental.pallas import tpu as pltpu


# ----------------------------------------------------------------------------
# Parameter setup (plain JAX glue): gaussian orthogonal random features.
# Mirrors gaussian_orthogonal_random_matrix from the PyTorch module.
# ----------------------------------------------------------------------------
def gaussian_orthogonal_random_matrix(key, nb_rows, nb_columns, scaling=0):
    nb_full_blocks = nb_rows // nb_columns
    keys = jax.random.split(key, nb_full_blocks + 2)
    blocks = []
    for i in range(nb_full_blocks):
        unstructured = jax.random.normal(keys[i], (nb_columns, nb_columns), jnp.float32)
        q_mat, _ = jnp.linalg.qr(unstructured)
        blocks.append(q_mat.T)
    remaining = nb_rows - nb_full_blocks * nb_columns
    if remaining > 0:
        unstructured = jax.random.normal(
            keys[nb_full_blocks], (nb_columns, nb_columns), jnp.float32
        )
        q_mat, _ = jnp.linalg.qr(unstructured)
        blocks.append(q_mat.T[:remaining])
    mat = jnp.concatenate(blocks, axis=0)  # (nb_rows, nb_columns)
    if scaling == 0:
        multiplier = jnp.linalg.norm(
            jax.random.normal(keys[-1], (nb_rows, nb_columns), jnp.float32), axis=1
        )
    elif scaling == 1:
        multiplier = math.sqrt(float(nb_columns)) * jnp.ones((nb_rows,), jnp.float32)
    else:
        raise ValueError(f"{scaling} != 0, 1")
    return multiplier[:, None] * mat


# ----------------------------------------------------------------------------
# Pallas kernel: G (batch, head) slices per grid step.
#   q_ref, k_ref : (G, N, D)   v_ref : (G, N, E)
#   proj_ref     : (D, Mp)     pre-scaled by D**-0.25, pre-transposed, zero-padded
#   o_ref        : (G, N, E)
# ----------------------------------------------------------------------------
def fast_attention_kernel(q_ref, k_ref, v_ref, proj_ref, o_ref, *, dim_heads, nb_features):
    G, N, D = q_ref.shape
    Mp = proj_ref.shape[-1]

    dn2 = float(dim_heads) ** (-0.5)     # data_normalizer**2 (dn itself is folded into proj)
    ratio = float(nb_features) ** (-0.5)
    eps = 1e-4

    # Native-dtype operands for the MXU (f32 or bf16); accumulate in f32.
    q = q_ref[...].reshape(G * N, D)
    k = k_ref[...].reshape(G * N, D)
    v = v_ref[...]                       # (G, N, E)
    proj_t = proj_ref[...]               # (D, Mp)

    # One projection matmul for all G heads at once: (G*N, D) @ (D, Mp).
    q_dash = jnp.dot(q, proj_t, preferred_element_type=jnp.float32)   # (G*N, Mp) f32
    k_dash = jnp.dot(k, proj_t, preferred_element_type=jnp.float32)   # (G*N, Mp) f32

    qf32 = q.astype(jnp.float32)
    kf32 = k.astype(jnp.float32)
    diag_q = jnp.sum(qf32 * qf32, axis=-1, keepdims=True) * (0.5 * dn2)  # (G*N, 1)
    diag_k = jnp.sum(kf32 * kf32, axis=-1, keepdims=True) * (0.5 * dn2)  # (G*N, 1)

    if nb_features < Mp:
        # Static lane mask for the zero-padded feature columns.
        col = jax.lax.broadcasted_iota(jnp.int32, (1, Mp), 1) < nb_features
        q_max = jnp.max(jnp.where(col, q_dash, -jnp.inf), axis=-1, keepdims=True)
    else:
        col = None
        q_max = jnp.max(q_dash, axis=-1, keepdims=True)

    # is_query=True : subtract per-row max, add eps OUTSIDE the exp.
    q_prime = ratio * (jnp.exp(q_dash - diag_q - q_max) + eps)           # (G*N, Mp)
    # is_query=False: eps added INSIDE the exp (matches the PyTorch reference).
    k_prime = ratio * jnp.exp(k_dash - diag_k + eps)                     # (G*N, Mp)
    if col is not None:
        # Zero the padded feature columns so k_sum / context stay exact.
        k_prime = jnp.where(col, k_prime, 0.0)

    qp = q_prime.reshape(G, N, Mp)
    kp = k_prime.reshape(G, N, Mp)

    # linear attention, per head (batched over G):
    #   context = einsum('nd,ne->de', k', v)
    #   d_inv   = 1 / (einsum('nd,d->n', q', sum_n k') + 1e-8)
    #   out     = einsum('de,nd,n->ne', context, q', d_inv)
    k_sum = jnp.sum(kp, axis=1, keepdims=True)                           # (G, 1, Mp)
    denom = jnp.sum(qp * k_sum, axis=-1, keepdims=True) + 1e-8           # (G, N, 1)
    d_inv = pl.reciprocal(denom, approx=True)                            # EUP slot
    d_inv = d_inv * (2.0 - denom * d_inv)                                # 1 Newton step

    mm_dtype = v_ref.dtype
    # Contract over N directly — no explicit (N,Mp)->(Mp,N) transpose.
    context = jnp.einsum(
        "gnm,gne->gme", kp.astype(mm_dtype), v, preferred_element_type=jnp.float32
    )                                                                    # (G, Mp, E)
    out = jnp.einsum(
        "gnm,gme->gne", qp.astype(mm_dtype), context.astype(mm_dtype),
        preferred_element_type=jnp.float32,
    ) * d_inv                                                            # (G, N, E)

    o_ref[...] = out.astype(o_ref.dtype)


# ----------------------------------------------------------------------------
# Wrapper
# ----------------------------------------------------------------------------
def _pick_group_size(BH, N, D, E, Mp, vmem_budget_bytes=24 << 20):
    """Largest head-group G (divisor of BH) that fits VMEM; prefer >=2 grid steps
    for v7x megacore, and enough rows (G*N >= 256) to fill the MXU."""
    per_head = 4 * (4 * N * Mp + Mp * E + 2 * N * D + 2 * N * E)
    divisors = [g for g in range(1, BH + 1) if BH % g == 0]
    feasible = [g for g in divisors if g * per_head <= vmem_budget_bytes] or [1]
    multi = [g for g in feasible if BH // g >= 2] or feasible
    filled = [g for g in multi if g * N >= 256]
    return min(filled) if filled else max(multi)


def fast_attention(q, k, v, projection_matrix, *, group_size=None):
    B, H, N, D = q.shape
    E = v.shape[-1]
    M = projection_matrix.shape[0]
    BH = B * H

    # Pad nb_features up to a full 128-lane width (masked in-kernel).
    Mp = max(128, ((M + 127) // 128) * 128)
    dn = float(D) ** (-0.25)
    proj_pad = jnp.zeros((Mp, D), projection_matrix.dtype).at[:M].set(projection_matrix)
    proj_t = (dn * proj_pad).T.astype(q.dtype)    # (D, Mp), pre-scaled + pre-transposed

    G = group_size if group_size is not None else _pick_group_size(BH, N, D, E, Mp)
    assert BH % G == 0, "group size must divide batch*heads"

    qf = q.reshape(BH, N, D)
    kf = k.reshape(BH, N, D)
    vf = v.reshape(BH, N, E)

    # TODO(synk): for long sequences, tile N with accumulated k_sum/context scratch
    # (two-phase, pl.when init/finalize) to bound VMEM on v7x (64 MiB) / v5e.
    out = pl.pallas_call(
        partial(fast_attention_kernel, dim_heads=D, nb_features=M),
        out_shape=jax.ShapeDtypeStruct((BH, N, E), q.dtype),
        grid_spec=pltpu.PrefetchScalarGridSpec(
            num_scalar_prefetch=0,
            grid=(BH // G,),
            in_specs=[
                pl.BlockSpec((G, N, D), lambda i: (i, 0, 0)),
                pl.BlockSpec((G, N, D), lambda i: (i, 0, 0)),
                pl.BlockSpec((G, N, E), lambda i: (i, 0, 0)),
                pl.BlockSpec((D, Mp), lambda i: (0, 0)),
            ],
            out_specs=pl.BlockSpec((G, N, E), lambda i: (i, 0, 0)),
        ),
        compiler_params=pltpu.CompilerParams(
            dimension_semantics=("parallel",),
            vmem_limit_bytes=32 * 1024 * 1024,
        ),
    )(qf, kf, vf, proj_t)

    return out.reshape(B, H, N, E)


# ----------------------------------------------------------------------------
# Pure-JAX reference (mirrors the PyTorch forward) for a sanity check
# ----------------------------------------------------------------------------
def fast_attention_ref(q, k, v, proj):
    D = q.shape[-1]
    M = proj.shape[0]
    dn = float(D) ** (-0.25)
    ratio = float(M) ** (-0.5)
    eps = 1e-4

    def feat(x, is_query):
        x_dash = jnp.einsum("bhid,jd->bhij", dn * x, proj)
        diag = (jnp.sum(x * x, axis=-1) * 0.5 * dn * dn)[..., None]
        if is_query:
            return ratio * (
                jnp.exp(x_dash - diag - jnp.max(x_dash, axis=-1, keepdims=True)) + eps
            )
        return ratio * jnp.exp(x_dash - diag + eps)

    qp = feat(q, True)
    kp = feat(k, False)
    context = jnp.einsum("bhnd,bhne->bhde", kp, v)
    d_inv = 1.0 / (jnp.einsum("bhnd,bhd->bhn", qp, kp.sum(axis=-2)) + 1e-8)
    return jnp.einsum("bhde,bhnd,bhn->bhne", context, qp, d_inv)


if __name__ == "__main__":
    # Module config: dim_heads=16 -> nb_features = int(16 * log(16)) = 44
    dim_heads = 16
    nb_features = int(dim_heads * math.log(dim_heads))  # 44
    B, H, N = 2, 2, 8

    key = jax.random.PRNGKey(0)
    kq, kk, kv, kp = jax.random.split(key, 4)
    q = jax.random.normal(kq, (B, H, N, dim_heads), jnp.float32)
    k = jax.random.normal(kk, (B, H, N, dim_heads), jnp.float32)
    v = jax.random.normal(kv, (B, H, N, dim_heads), jnp.float32)
    proj = gaussian_orthogonal_random_matrix(kp, nb_features, dim_heads, scaling=0)

    out = fast_attention(q, k, v, proj)
    out = jax.block_until_ready(out)

    ref = fast_attention_ref(q, k, v, proj)
    assert out.shape == (B, H, N, dim_heads)
    assert jnp.allclose(out, ref, atol=5e-4, rtol=5e-4), "mismatch vs reference"

    print("KERNEL_OK")
</pallas_src>

<mosaic_0001>
module attributes {stable_mosaic.version = 11 : i64} {
  func.func @fast_attention_kernel(%arg0: i32, %arg1: memref<2x8x16xf32, #tpu.memory_space<vmem>>, %arg2: memref<2x8x16xf32, #tpu.memory_space<vmem>>, %arg3: memref<2x8x16xf32, #tpu.memory_space<vmem>>, %arg4: memref<16x128xf32, #tpu.memory_space<vmem>>, %arg5: memref<2x8x16xf32, #tpu.memory_space<vmem>>) attributes {dimension_semantics = [#tpu.dimension_semantics<parallel>], iteration_bounds = array<i64: 2>, scalar_prefetch = 0 : i64, scratch_operands = 0 : i64, tpu.core_type = #tpu.core_type<tc>, window_params = [{transform_indices = @transform_0, window_bounds = array<i64: 2, 8, 16>}, {transform_indices = @transform_1, window_bounds = array<i64: 2, 8, 16>}, {transform_indices = @transform_2, window_bounds = array<i64: 2, 8, 16>}, {pipeline_mode = #tpu.pipeline_mode<synchronous>, transform_indices = @transform_3, window_bounds = array<i64: 16, 128>}, {transform_indices = @transform_4, window_bounds = array<i64: 2, 8, 16>}]} {
    %c0 = arith.constant 0 : index
    %c0_0 = arith.constant 0 : index
    %c0_1 = arith.constant 0 : index
    %0 = vector.load %arg1[%c0, %c0_0, %c0_1] : memref<2x8x16xf32, #tpu.memory_space<vmem>>, vector<2x8x16xf32>
    %1 = vector.shape_cast %0 : vector<2x8x16xf32> to vector<16x16xf32>
    %c0_2 = arith.constant 0 : index
    %c0_3 = arith.constant 0 : index
    %c0_4 = arith.constant 0 : index
    %2 = vector.load %arg2[%c0_2, %c0_3, %c0_4] : memref<2x8x16xf32, #tpu.memory_space<vmem>>, vector<2x8x16xf32>
    %3 = vector.shape_cast %2 : vector<2x8x16xf32> to vector<16x16xf32>
    %c0_5 = arith.constant 0 : index
    %c0_6 = arith.constant 0 : index
    %c0_7 = arith.constant 0 : index
    %4 = vector.load %arg3[%c0_5, %c0_6, %c0_7] : memref<2x8x16xf32, #tpu.memory_space<vmem>>, vector<2x8x16xf32>
    %c0_8 = arith.constant 0 : index
    %c0_9 = arith.constant 0 : index
    %5 = vector.load %arg4[%c0_8, %c0_9] : memref<16x128xf32, #tpu.memory_space<vmem>>, vector<16x128xf32>
    %cst = arith.constant dense<0.000000e+00> : vector<16x128xf32>
    %6 = tpu.matmul %1, %5, %cst {dimension_numbers = #tpu.dot_dimension_numbers<[1], [0], [0], [1], [0, 0, 1, 1], [], []>} : vector<16x16xf32>, vector<16x128xf32>, vector<16x128xf32> -> vector<16x128xf32>
    %cst_10 = arith.constant dense<0.000000e+00> : vector<16x128xf32>
    %7 = tpu.matmul %3, %5, %cst_10 {dimension_numbers = #tpu.dot_dimension_numbers<[1], [0], [0], [1], [0, 0, 1, 1], [], []>} : vector<16x16xf32>, vector<16x128xf32>, vector<16x128xf32> -> vector<16x128xf32>
    %8 = arith.mulf %1, %1 : vector<16x16xf32>
    %cst_11 = arith.constant dense<0.000000e+00> : vector<16xf32>
    %9 = vector.multi_reduction <add>, %8, %cst_11 [1] : vector<16x16xf32> to vector<16xf32>
    %10 = vector.shape_cast %9 : vector<16xf32> to vector<16x1xf32>
    %cst_12 = arith.constant 1.250000e-01 : f32
    %11 = vector.broadcast %cst_12 : f32 to vector<16x1xf32>
    %12 = arith.mulf %10, %11 : vector<16x1xf32>
    %13 = arith.mulf %3, %3 : vector<16x16xf32>
    %cst_13 = arith.constant dense<0.000000e+00> : vector<16xf32>
    %14 = vector.multi_reduction <add>, %13, %cst_13 [1] : vector<16x16xf32> to vector<16xf32>
    %15 = vector.shape_cast %14 : vector<16xf32> to vector<16x1xf32>
    %cst_14 = arith.constant 1.250000e-01 : f32
    %16 = vector.broadcast %cst_14 : f32 to vector<16x1xf32>
    %17 = arith.mulf %15, %16 : vector<16x1xf32>
    %18 = tpu.iota {dimensions = array<i32: 1>} : vector<1x128xi32>
    %c44_i32 = arith.constant 44 : i32
    %19 = vector.broadcast %c44_i32 : i32 to vector<1x128xi32>
    %20 = arith.cmpi slt, %18, %19 : vector<1x128xi32>
    %cst_15 = arith.constant 0xFF800000 : f32
    %21 = vector.shape_cast %20 : vector<1x128xi1> to vector<1x128xi1>
    %22 = vector.broadcast %21 : vector<1x128xi1> to vector<16x128xi1>
    %23 = vector.broadcast %cst_15 : f32 to vector<16x128xf32>
    %24 = arith.select %22, %6, %23 : vector<16x128xi1>, vector<16x128xf32>
    %cst_16 = arith.constant dense<0xFF800000> : vector<16xf32>
    %25 = vector.multi_reduction <maximumf>, %24, %cst_16 [1] : vector<16x128xf32> to vector<16xf32>
    %26 = vector.shape_cast %25 : vector<16xf32> to vector<16x1xf32>
    %27 = vector.broadcast %12 : vector<16x1xf32> to vector<16x128xf32>
    %28 = arith.subf %6, %27 : vector<16x128xf32>
    %29 = vector.broadcast %26 : vector<16x1xf32> to vector<16x128xf32>
    %30 = arith.subf %28, %29 : vector<16x128xf32>
    %31 = math.exp %30 : vector<16x128xf32>
    %cst_17 = arith.constant 9.99999974E-5 : f32
    %32 = vector.broadcast %cst_17 : f32 to vector<16x128xf32>
    %33 = arith.addf %31, %32 : vector<16x128xf32>
    %cst_18 = arith.constant 0.150755674 : f32
    %34 = vector.broadcast %cst_18 : f32 to vector<16x128xf32>
    %35 = arith.mulf %34, %33 : vector<16x128xf32>
    %36 = vector.broadcast %17 : vector<16x1xf32> to vector<16x128xf32>
    %37 = arith.subf %7, %36 : vector<16x128xf32>
    %cst_19 = arith.constant 9.99999974E-5 : f32
    %38 = vector.broadcast %cst_19 : f32 to vector<16x128xf32>
    %39 = arith.addf %37, %38 : vector<16x128xf32>
    %40 = math.exp %39 : vector<16x128xf32>
    %cst_20 = arith.constant 0.150755674 : f32
    %41 = vector.broadcast %cst_20 : f32 to vector<16x128xf32>
    %42 = arith.mulf %41, %40 : vector<16x128xf32>
    %cst_21 = arith.constant 0.000000e+00 : f32
    %43 = vector.shape_cast %20 : vector<1x128xi1> to vector<1x128xi1>
    %44 = vector.broadcast %43 : vector<1x128xi1> to vector<16x128xi1>
    %45 = vector.broadcast %cst_21 : f32 to vector<16x128xf32>
    %46 = arith.select %44, %42, %45 : vector<16x128xi1>, vector<16x128xf32>
    %47 = vector.shape_cast %35 : vector<16x128xf32> to vector<2x8x128xf32>
    %48 = vector.shape_cast %46 : vector<16x128xf32> to vector<2x8x128xf32>
    %cst_22 = arith.constant dense<0.000000e+00> : vector<2x128xf32>
    %49 = vector.multi_reduction <add>, %48, %cst_22 [1] : vector<2x8x128xf32> to vector<2x128xf32>
    %50 = vector.shape_cast %49 : vector<2x128xf32> to vector<2x1x128xf32>
    %51 = vector.broadcast %50 : vector<2x1x128xf32> to vector<2x8x128xf32>
    %52 = arith.mulf %47, %51 : vector<2x8x128xf32>
    %cst_23 = arith.constant dense<0.000000e+00> : vector<2x8xf32>
    %53 = vector.multi_reduction <add>, %52, %cst_23 [2] : vector<2x8x128xf32> to vector<2x8xf32>
    %54 = vector.shape_cast %53 : vector<2x8xf32> to vector<2x8x1xf32>
    %cst_24 = arith.constant 9.99999993E-9 : f32
    %55 = vector.broadcast %cst_24 : f32 to vector<2x8x1xf32>
    %56 = arith.addf %54, %55 : vector<2x8x1xf32>
    %57 = tpu.reciprocal %56 {approx = true} : vector<2x8x1xf32> -> vector<2x8x1xf32>
    %58 = arith.mulf %56, %57 : vector<2x8x1xf32>
    %cst_25 = arith.constant 2.000000e+00 : f32
    %59 = vector.broadcast %cst_25 : f32 to vector<2x8x1xf32>
    %60 = arith.subf %59, %58 : vector<2x8x1xf32>
    %61 = arith.mulf %57, %60 : vector<2x8x1xf32>
    "tpu.trace_start"() <{level = 10 : i32, message = "gnm,gne->gme"}> : () -> ()
    %cst_26 = arith.constant dense<0.000000e+00> : vector<2x128x16xf32>
    %62 = tpu.matmul %48, %4, %cst_26 {dimension_numbers = #tpu.dot_dimension_numbers<[1], [1], [2], [2], [0, 0, 0, 2, 1, 2], [0], [0]>} : vector<2x8x128xf32>, vector<2x8x16xf32>, vector<2x128x16xf32> -> vector<2x128x16xf32>
    "tpu.trace_stop"() : () -> ()
    "tpu.trace_start"() <{level = 10 : i32, message = "gnm,gme->gne"}> : () -> ()
    %cst_27 = arith.constant dense<0.000000e+00> : vector<2x8x16xf32>
    %63 = tpu.matmul %47, %62, %cst_27 {dimension_numbers = #tpu.dot_dimension_numbers<[2], [1], [1], [2], [0, 0, 0, 1, 1, 2], [0], [0]>} : vector<2x8x128xf32>, vector<2x128x16xf32>, vector<2x8x16xf32> -> vector<2x8x16xf32>
    "tpu.trace_stop"() : () -> ()
    %64 = vector.broadcast %61 : vector<2x8x1xf32> to vector<2x8x16xf32>
    %65 = arith.mulf %63, %64 : vector<2x8x16xf32>
    %c0_28 = arith.constant 0 : index
    %c0_29 = arith.constant 0 : index
    %c0_30 = arith.constant 0 : index
    %66 = vector.load %arg5[%c0_28, %c0_29, %c0_30] : memref<2x8x16xf32, #tpu.memory_space<vmem>>, vector<2x8x16xf32>
    tpu.vector_store %arg5[%c0_28, %c0_29, %c0_30], %65 {strides = array<i32>} : memref<2x8x16xf32, #tpu.memory_space<vmem>>, vector<2x8x16xf32>,
    return
  }
  func.func @transform_0(%arg0: i32) -> (i32, i32, i32) {
    %c0_i32 = arith.constant 0 : i32
    %c0_i32_0 = arith.constant 0 : i32
    %c0_i32_1 = arith.constant 0 : i32
    return %arg0, %c0_i32, %c0_i32_0 : i32, i32, i32
  }
  func.func @transform_1(%arg0: i32) -> (i32, i32, i32) {
    %c0_i32 = arith.constant 0 : i32
    %c0_i32_0 = arith.constant 0 : i32
    %c0_i32_1 = arith.constant 0 : i32
    return %arg0, %c0_i32, %c0_i32_0 : i32, i32, i32
  }
  func.func @transform_2(%arg0: i32) -> (i32, i32, i32) {
    %c0_i32 = arith.constant 0 : i32
    %c0_i32_0 = arith.constant 0 : i32
    %c0_i32_1 = arith.constant 0 : i32
    return %arg0, %c0_i32, %c0_i32_0 : i32, i32, i32
  }
  func.func @transform_3(%arg0: i32) -> (i32, i32) {
    %c0_i32 = arith.constant 0 : i32
    %c0_i32_0 = arith.constant 0 : i32
    %c0_i32_1 = arith.constant 0 : i32
    return %c0_i32, %c0_i32_0 : i32, i32
  }
  func.func @transform_4(%arg0: i32) -> (i32, i32, i32) {
    %c0_i32 = arith.constant 0 : i32
    %c0_i32_0 = arith.constant 0 : i32
    %c0_i32_1 = arith.constant 0 : i32
    return %arg0, %c0_i32, %c0_i32_0 : i32, i32, i32
  }
}

</mosaic_0001>

<llo_original>
// kernel: tpu_custom_call.1
$region0: #{tpu_custom_call.1}
  #allocation0 [shape = 'u32[]', space=smem, size = 0x4, offset = 0x4, fixed_abs, tag = 'smem constant byte address 0x4 - core index']
  #allocation1 [shape = 'u32[144,128]{1,0:T(1,128)}', space=vmem, size = 0x12000, scoped, tag = 'internal scratch']
  %s0 = inlined_call_operand.hbm [shape: f32[4,8,16], index: 0, kind: input, shape index: {}]
  %s1 = inlined_call_operand.hbm [shape: f32[4,8,16], index: 1, kind: input, shape index: {}]
  %s2 = inlined_call_operand.hbm [shape: f32[4,8,16], index: 2, kind: input, shape index: {}]
  %s3 = inlined_call_operand.hbm [shape: f32[16,128], index: 3, kind: input, shape index: {}]
  %s4 = inlined_call_operand.hbm [shape: f32[4,8,16], index: 4, kind: output, shape index: {}]
  %s5 = sld [smem:[#allocation0]]
  $region65: #{tpu_custom_call.1} parent=0
    _
  %s7 = ssub.s32 1, %s5
  %s8 = scalar_select 0, %s7, %s5
  $region1: #{tpu_custom_call.1} parent=0
    #allocation2 [shape = 'u8[16384]{0}', space=vmem, size = 0x4000, scoped, tag = 'input window, operand 0']
    #allocation3 [shape = 's32[2]{0}', space=sflag, size = 0x8, scoped, tag = 'scoped memory for tpu_custom_call.1']
    #allocation4 [shape = 's32[2]{0}', space=sflag, size = 0x8, scoped, tag = 'scoped memory for tpu_custom_call.1']
    #allocation5 [shape = 'u8[16384]{0}', space=vmem, size = 0x4000, scoped, tag = 'input window, operand 1']
    #allocation6 [shape = 's32[2]{0}', space=sflag, size = 0x8, scoped, tag = 'scoped memory for tpu_custom_call.1']
    #allocation7 [shape = 'u8[16384]{0}', space=vmem, size = 0x4000, scoped, tag = 'input window, operand 2']
    #allocation8 [shape = 'u8[8192]{0}', space=vmem, size = 0x2000, scoped, tag = 'input window, operand 3, single buffered']
    #allocation9 [shape = 's32[1]{0}', space=sflag, size = 0x4, scoped, tag = 'scoped memory for tpu_custom_call.1']
    #allocation10 [shape = 'u8[16384]{0}', space=vmem, size = 0x4000, scoped, tag = 'output window, operand 0']
    %9 = vsyncpa [#allocation3], 0
    %s10 = scalar_lea.sflag [#allocation3], 1
    %11 = vsyncpa %s10, 0
    %12 = vsyncpa [#allocation6], 0
    %s13 = scalar_lea.sflag [#allocation6], 1
    %14 = vsyncpa %s13, 0
    %15 = vsyncpa [#allocation9], 0
    %16 = vsyncpa [#allocation4], 0
    %s17 = scalar_lea.sflag [#allocation4], 1
    %18 = vsyncpa %s17, 0
    loop: start=0, step=1, limit=4
    $region2: #{tpu_custom_call.1} parent=1 // loop_pre_header
      _
    $region3: #{tpu_custom_call.1} parent=1 // loop_header
      %s20 = sphi 0, %s24
      %p21 = scmp.ge.s32.totalorder %s20, 4
      %s30 = sphi 0, %s32
      %s33 = sphi 0, %s30
      %s34 = sphi 0, %s33
      %s50 = sphi 0, %s34
      %s56 = sphi 0, %s58
      %s59 = sphi 0, %s56
      %s60 = sphi 0, %s59
      %s76 = sphi 0, %s60
      %s82 = sphi 0, %s84
      %s85 = sphi 0, %s82
      %s86 = sphi 0, %s85
      %s102 = sphi 0, %s86
      %s106 = sphi 0, %s106
      %s108 = sphi 0, %s106
      %s109 = sphi 0, %s108
      %s123 = sphi 0, %s109
      %s129 = sphi 0, %s131
      %s132 = sphi 0, %s129
      %s133 = sphi 0, %s132
      %s149 = sphi 0, %s133
    $region4: #{tpu_custom_call.1} parent=1 // loop_header_branch
      %23 = sbr.rel (%p21) target = $region8
    $region5: #{tpu_custom_call.1} parent=1 // loop_body
      %s25 = ssub.s32 %s20, 1
      %s26 = ssub.s32 %s20, 2
      %s27 = sadd.s32 %s20, 1
      %s28 = ssub.s32 %s20, %s27
      %p29 = scmp.eq.s32.totalorder %s28, 0
      %s31 = sadd.s32 %s30, 1
      %s32 = scalar_select %p29, %s30, %s31
      %p35 = pneg %p29
      %p36 = scmp.eq.s32.totalorder %s20, 1
      %p37 = por %p35, %p36
      %p38 = scmp.ne.s32.totalorder %s30, %s33
      %p39 = scmp.eq.s32.totalorder %s20, 0
      %p40 = por %p38, %p39
      %p41 = scmp.ne.s32.totalorder %s30, %s33
      %p42 = scmp.eq.s32.totalorder %s25, 1
      %p43 = por %p41, %p42
      %p44 = scmp.ne.s32.totalorder %s33, %s34
      %p45 = scmp.eq.s32.totalorder %s25, 0
      %p46 = por %p44, %p45
      %p47 = scmp.ne.s32.totalorder %s33, %s34
      %p48 = scmp.eq.s32.totalorder %s26, 1
      %p49 = por %p47, %p48
      %p51 = scmp.ne.s32.totalorder %s34, %s50
      %p52 = scmp.eq.s32.totalorder %s26, 0
      %p53 = por %p51, %p52
      %s54 = ssub.s32 %s20, %s27
      %p55 = scmp.eq.s32.totalorder %s54, 0
      %s57 = sadd.s32 %s56, 1
      %s58 = scalar_select %p55, %s56, %s57
      %p61 = pneg %p55
      %p62 = scmp.eq.s32.totalorder %s20, 1
      %p63 = por %p61, %p62
      %p64 = scmp.ne.s32.totalorder %s56, %s59
      %p65 = scmp.eq.s32.totalorder %s20, 0
      %p66 = por %p64, %p65
      %p67 = scmp.ne.s32.totalorder %s56, %s59
      %p68 = scmp.eq.s32.totalorder %s25, 1
      %p69 = por %p67, %p68
      %p70 = scmp.ne.s32.totalorder %s59, %s60
      %p71 = scmp.eq.s32.totalorder %s25, 0
      %p72 = por %p70, %p71
      %p73 = scmp.ne.s32.totalorder %s59, %s60
      %p74 = scmp.eq.s32.totalorder %s26, 1
      %p75 = por %p73, %p74
      %p77 = scmp.ne.s32.totalorder %s60, %s76
      %p78 = scmp.eq.s32.totalorder %s26, 0
      %p79 = por %p77, %p78
      %s80 = ssub.s32 %s20, %s27
      %p81 = scmp.eq.s32.totalorder %s80, 0
      %s83 = sadd.s32 %s82, 1
      %s84 = scalar_select %p81, %s82, %s83
      %p87 = pneg %p81
      %p88 = scmp.eq.s32.totalorder %s20, 1
      %p89 = por %p87, %p88
      %p90 = scmp.ne.s32.totalorder %s82, %s85
      %p91 = scmp.eq.s32.totalorder %s20, 0
      %p92 = por %p90, %p91
      %p93 = scmp.ne.s32.totalorder %s82, %s85
      %p94 = scmp.eq.s32.totalorder %s25, 1
      %p95 = por %p93, %p94
      %p96 = scmp.ne.s32.totalorder %s85, %s86
      %p97 = scmp.eq.s32.totalorder %s25, 0
      %p98 = por %p96, %p97
      %p99 = scmp.ne.s32.totalorder %s85, %s86
      %p100 = scmp.eq.s32.totalorder %s26, 1
      %p101 = por %p99, %p100
      %p103 = scmp.ne.s32.totalorder %s86, %s102
      %p104 = scmp.eq.s32.totalorder %s26, 0
      %p105 = por %p103, %p104
      %s107 = sadd.s32 %s106, 1
      %p110 = scmp.eq.s32.totalorder %s20, 1
      %p111 = scmp.ne.s32.totalorder %s106, %s108
      %p112 = scmp.eq.s32.totalorder %s20, 0
      %p113 = por %p111, %p112
      %p114 = scmp.ne.s32.totalorder %s106, %s108
      %p115 = scmp.eq.s32.totalorder %s25, 1
      %p116 = por %p114, %p115
      %p117 = scmp.ne.s32.totalorder %s108, %s109
      %p118 = scmp.eq.s32.totalorder %s25, 0
      %p119 = por %p117, %p118
      %p120 = scmp.ne.s32.totalorder %s108, %s109
      %p121 = scmp.eq.s32.totalorder %s26, 1
      %p122 = por %p120, %p121
      %p124 = scmp.ne.s32.totalorder %s109, %s123
      %p125 = scmp.eq.s32.totalorder %s26, 0
      %p126 = por %p124, %p125
      %s127 = ssub.s32 %s20, %s27
      %p128 = scmp.eq.s32.totalorder %s127, 0
      %s130 = sadd.s32 %s129, 1
      %s131 = scalar_select %p128, %s129, %s130
      %p134 = pneg %p128
      %p135 = scmp.eq.s32.totalorder %s20, 1
      %p136 = por %p134, %p135
      %p137 = scmp.ne.s32.totalorder %s129, %s132
      %p138 = scmp.eq.s32.totalorder %s20, 0
      %p139 = por %p137, %p138
      %p140 = scmp.ne.s32.totalorder %s129, %s132
      %p141 = scmp.eq.s32.totalorder %s25, 1
      %p142 = por %p140, %p141
      %p143 = scmp.ne.s32.totalorder %s132, %s133
      %p144 = scmp.eq.s32.totalorder %s25, 0
      %p145 = por %p143, %p144
      %p146 = scmp.ne.s32.totalorder %s132, %s133
      %p147 = scmp.eq.s32.totalorder %s26, 1
      %p148 = por %p146, %p147
      %p150 = scmp.ne.s32.totalorder %s133, %s149
      %p151 = scmp.eq.s32.totalorder %s26, 0
      %p152 = por %p150, %p151
      %p153 = scmp.le.s32.totalorder 1, %s20
      %p154 = scmp.lt.s32.totalorder %s20, 3
      %p155 = pnand %p153, %p154
      %p156 = pneg %p155
      // Predicated region
      $region9: #{tpu_custom_call.1} parent=5 // pred_check
        _
      $region10: #{tpu_custom_call.1} parent=5 // pred_check_branch
        %158 = sbr.rel (%p155) target = $region12
      $region11: #{tpu_custom_call.1} parent=5 // pred_region
        %s159 = ssub.s32 %s20, 1
        // Predicated region
        $region13: #{tpu_custom_call.1} parent=11 // pred_check
          %p160 = pneg %p119
        $region14: #{tpu_custom_call.1} parent=11 // pred_check_branch
          %162 = sbr.rel (%p160) target = $region16
        $region15: #{tpu_custom_call.1} parent=11 // pred_region
          %s164 = ssub.s32 256, 256
          %165 = vsyncadd [#allocation9], %s164
          %s166 = sshll.u32 [#allocation8], 4
          %s167 = int_to_ptr.vmem [resolvable:$true] %s166
          %172 = dma.hbm_to_vmem [thread:$0]  %s3, 256, %s167, [#allocation9], 128, 128, 8
        $region16: #{tpu_custom_call.1} parent=11 // pred_fallthru
          _
      $region12: #{tpu_custom_call.1} parent=5 // pred_fallthru
        _
      %p173 = scmp.lt.s32.totalorder %s20, 2
      // Predicated region
      $region17: #{tpu_custom_call.1} parent=5 // pred_check
        %p174 = pneg %p173
      $region18: #{tpu_custom_call.1} parent=5 // pred_check_branch
        %176 = sbr.rel (%p174) target = $region20
      $region19: #{tpu_custom_call.1} parent=5 // pred_region
        // Predicated region
        $region21: #{tpu_custom_call.1} parent=19 // pred_check
          %p177 = pneg %p40
        $region22: #{tpu_custom_call.1} parent=19 // pred_check_branch
          %179 = sbr.rel (%p177) target = $region24
        $region23: #{tpu_custom_call.1} parent=19 // pred_region
          %s180 = sand.u32 %s30, 1
          %s181 = scalar_lea.sflag [#allocation3], %s180
          %s182 = sand.u32 %s30, 1
          %s183 = smul.addr %s182, 16
          %s184 = scalar_lea.vmem [#allocation2], %s183
          %s185 = smul.u32 2, %s20
          %s187 = ssub.s32 256, 256
          %188 = vsyncadd %s181, %s187
          %s189 = smul.addr %s185, 128
          %s190 = scalar_lea.hbm %s0, %s189
          %s191 = sshll.u32 %s184, 4
          %s192 = int_to_ptr.vmem [resolvable:$true] %s191
          %197 = dma.hbm_to_vmem [thread:$0]  %s190, 256, %s192, %s181, 128, 128, 8
        $region24: #{tpu_custom_call.1} parent=19 // pred_fallthru
          _
        // Predicated region
        $region25: #{tpu_custom_call.1} parent=19 // pred_check
          %p198 = pneg %p66
        $region26: #{tpu_custom_call.1} parent=19 // pred_check_branch
          %200 = sbr.rel (%p198) target = $region28
        $region27: #{tpu_custom_call.1} parent=19 // pred_region
          %s201 = sand.u32 %s20, 1
          %s202 = scalar_lea.sflag [#allocation6], %s201
          %s203 = sand.u32 %s56, 1
          %s204 = smul.addr %s203, 16
          %s205 = scalar_lea.vmem [#allocation5], %s204
          %s206 = smul.u32 2, %s20
          %s208 = ssub.s32 256, 256
          %209 = vsyncadd %s202, %s208
          %s210 = smul.addr %s206, 128
          %s211 = scalar_lea.hbm %s1, %s210
          %s212 = sshll.u32 %s205, 4
          %s213 = int_to_ptr.vmem [resolvable:$true] %s212
          %218 = dma.hbm_to_vmem [thread:$0]  %s211, 256, %s213, %s202, 128, 128, 8
        $region28: #{tpu_custom_call.1} parent=19 // pred_fallthru
          _
        // Predicated region
        $region29: #{tpu_custom_call.1} parent=19 // pred_check
          %p219 = pneg %p92
        $region30: #{tpu_custom_call.1} parent=19 // pred_check_branch
          %221 = sbr.rel (%p219) target = $region32
        $region31: #{tpu_custom_call.1} parent=19 // pred_region
          %s222 = sand.u32 %s20, 1
          %s223 = scalar_lea.sflag [#allocation6], %s222
          %s224 = sand.u32 %s82, 1
          %s225 = smul.addr %s224, 16
          %s226 = scalar_lea.vmem [#allocation7], %s225
          %s227 = smul.u32 2, %s20
          %s229 = ssub.s32 256, 256
          %230 = vsyncadd %s223, %s229
          %s231 = smul.addr %s227, 128
          %s232 = scalar_lea.hbm %s2, %s231
          %s233 = sshll.u32 %s226, 4
          %s234 = int_to_ptr.vmem [resolvable:$true] %s233
          %239 = dma.hbm_to_vmem [thread:$0]  %s232, 256, %s234, %s223, 128, 128, 8
        $region32: #{tpu_custom_call.1} parent=19 // pred_fallthru
          _
      $region20: #{tpu_custom_call.1} parent=5 // pred_fallthru
        _
      %p240 = scmp.le.s32.totalorder 1, %s20
      %p241 = scmp.lt.s32.totalorder %s20, 3
      %p242 = pnand %p240, %p241
      %p243 = pneg %p242
      // Predicated region
      $region33: #{tpu_custom_call.1} parent=5 // pred_check
        _
      $region34: #{tpu_custom_call.1} parent=5 // pred_check_branch
        %245 = sbr.rel (%p242) target = $region36
      $region35: #{tpu_custom_call.1} parent=5 // pred_region
        %s246 = ssub.s32 %s20, 1
        %s247 = sand.u32 %s33, 1
        %s248 = scalar_lea.sflag [#allocation3], %s247
        %s249 = sand.u32 %s33, 1
        %s250 = smul.addr %s249, 16
        %s251 = scalar_lea.vmem [#allocation2], %s250
        // Predicated region
        $region37: #{tpu_custom_call.1} parent=35 // pred_check
          %p252 = pneg %p46
        $region38: #{tpu_custom_call.1} parent=35 // pred_check_branch
          %254 = sbr.rel (%p252) target = $region40
        $region39: #{tpu_custom_call.1} parent=35 // pred_region
          %255 = dma.done %s248, 256
        $region40: #{tpu_custom_call.1} parent=35 // pred_fallthru
          _
        %s256 = sand.u32 %s25, 1
        %s257 = scalar_lea.sflag [#allocation6], %s256
        %s258 = sand.u32 %s59, 1
        %s259 = smul.addr %s258, 16
        %s260 = scalar_lea.vmem [#allocation5], %s259
        // Predicated region
        $region41: #{tpu_custom_call.1} parent=35 // pred_check
          %p261 = pneg %p72
        $region42: #{tpu_custom_call.1} parent=35 // pred_check_branch
          %263 = sbr.rel (%p261) target = $region44
        $region43: #{tpu_custom_call.1} parent=35 // pred_region
          %264 = dma.done %s257, 256
        $region44: #{tpu_custom_call.1} parent=35 // pred_fallthru
          _
        %s265 = sand.u32 %s25, 1
        %s266 = scalar_lea.sflag [#allocation6], %s265
        %s267 = sand.u32 %s85, 1
        %s268 = smul.addr %s267, 16
        %s269 = scalar_lea.vmem [#allocation7], %s268
        // Predicated region
        $region45: #{tpu_custom_call.1} parent=35 // pred_check
          %p270 = pneg %p98
        $region46: #{tpu_custom_call.1} parent=35 // pred_check_branch
          %272 = sbr.rel (%p270) target = $region48
        $region47: #{tpu_custom_call.1} parent=35 // pred_region
          %273 = dma.done %s266, 256
        $region48: #{tpu_custom_call.1} parent=35 // pred_fallthru
          _
        // Predicated region
        $region49: #{tpu_custom_call.1} parent=35 // pred_check
          %p274 = pneg %p119
        $region50: #{tpu_custom_call.1} parent=35 // pred_check_branch
          %276 = sbr.rel (%p274) target = $region52
        $region51: #{tpu_custom_call.1} parent=35 // pred_region
          %277 = dma.done [#allocation9], 256
        $region52: #{tpu_custom_call.1} parent=35 // pred_fallthru
          _
        %s278 = sand.u32 %s33, 1
        %s279 = scalar_lea.sflag [#allocation3], %s278
        %s280 = sand.u32 %s33, 1
        %s281 = smul.addr %s280, 16
        %s282 = scalar_lea.vmem [#allocation2], %s281
        %p283 = pneg %p46
        %p284 = pneg %p43
        %s285 = sand.u32 %s25, 1
        %s286 = scalar_lea.sflag [#allocation6], %s285
        %s287 = sand.u32 %s59, 1
        %s288 = smul.addr %s287, 16
        %s289 = scalar_lea.vmem [#allocation5], %s288
        %p290 = pneg %p72
        %p291 = pneg %p69
        %s292 = sand.u32 %s25, 1
        %s293 = scalar_lea.sflag [#allocation6], %s292
        %s294 = sand.u32 %s85, 1
        %s295 = smul.addr %s294, 16
        %s296 = scalar_lea.vmem [#allocation7], %s295
        %p297 = pneg %p98
        %p298 = pneg %p95
        %p299 = pneg %p119
        %p300 = pneg %p116
        %p301 = pneg %p145
        %p302 = pneg %p142
        %s303 = sand.u32 %s132, 1
        %s304 = scalar_lea.sflag [#allocation4], %s303
        %s305 = sand.u32 %s132, 1
        %s306 = smul.addr %s305, 16
        %s307 = scalar_lea.vmem [#allocation10], %s306
        %s308 = smul.u32 2, %s25
        %s309 = smul.u32 2, %s25
        %s310 = smul.u32 2, %s25
        %s311 = smul.u32 2, %s25
        %v312 = vld [vmem:[%s251] sm:$0xff]
        %v313 = vld [vmem:[%s251 + $0x8] sm:$0xff]
        %v314 = vld [vmem:[%s260] sm:$0xff]
        %v315 = vld [vmem:[%s260 + $0x8] sm:$0xff]
        %v316 = vld [vmem:[%s269] sm:$0xff]
        %v317 = vld [vmem:[%s269 + $0x8] sm:$0xff]
        %v318 = vld [vmem:[#allocation8] sm:$0xff]
        %v319 = vld [vmem:[#allocation8 + $0x8] sm:$0xff]
        %vm320 = vcmask 130048
        %v322 = vsel %vm320, %v312, 0
        %v325 = vsel %vm320, %v313, 0
        %327 = vmatprep.subr.mxu0 0.0
        %328 = vmatpush1.msra.mxu0 %v318
        %329 = vmatprep.subr.mxu0 0.0
        %330 = vmatpush1.msra.mxu0 %v319
        %331 = vmatprep.subr.mxu0 0.0
        %332 = vmatpush1.msra.mxu0 0.0
        %333 = vmatprep.subr.mxu0 0.0
        %334 = vmatpush1.msra.mxu0 0.0
        %335 = vmatprep.subr.mxu0 0.0
        %336 = vmatpush1.msra.mxu0 0.0
        %337 = vmatprep.subr.mxu0 0.0
        %338 = vmatpush1.msra.mxu0 0.0
        %339 = vmatprep.subr.mxu0 0.0
        %340 = vmatpush1.msra.mxu0 0.0
        %341 = vmatprep.subr.mxu0 0.0
        %342 = vmatpush1.msra.mxu0 0.0
        %343 = vmatprep.subr.mxu0 0.0
        %344 = vmatpush1.msra.mxu0 0.0
        %345 = vmatprep.subr.mxu0 0.0
        %346 = vmatpush1.msra.mxu0 0.0
        %347 = vmatprep.subr.mxu0 0.0
        %348 = vmatpush1.msra.mxu0 0.0
        %349 = vmatprep.subr.mxu0 0.0
        %350 = vmatpush1.msra.mxu0 0.0
        %351 = vmatprep.subr.mxu0 0.0
        %352 = vmatpush1.msra.mxu0 0.0
        %353 = vmatprep.subr.mxu0 0.0
        %354 = vmatpush1.msra.mxu0 0.0
        %355 = vmatprep.subr.mxu0 0.0
        %356 = vmatpush1.msra.mxu0 0.0
        %357 = vmatprep.subr.mxu0 0.0
        %358 = vmatpush1.msra.mxu0 0.0
        %359 = vmatprep.subr.mxu0 0.0
        %360 = vmatpush1.msra.mxu0 0.0
        %361 = vmatprep.subr.mxu0 0.0
        %362 = vmatpush1.msra.mxu0 0.0
        %363 = vmatprep.subr.mxu0 0.0
        %364 = vmatpush1.msra.mxu0 0.0
        %365 = vmatprep.subr.mxu0 0.0
        %366 = vmatpush1.msra.mxu0 0.0
        %367 = vmatprep.subr.mxu0 0.0
        %368 = vmatpush1.msra.mxu0 0.0
        %369 = vmatprep.subr.mxu0 0.0
        %370 = vmatpush1.msra.mxu0 0.0
        %371 = vmatprep.subr.mxu0 0.0
        %372 = vmatpush1.msra.mxu0 0.0
        %373 = vmatprep.subr.mxu0 0.0
        %374 = vmatpush1.msra.mxu0 0.0
        %375 = vmatprep.subr.mxu0 0.0
        %376 = vmatpush1.msra.mxu0 0.0
        %377 = vmatprep.subr.mxu0 0.0
        %378 = vmatpush1.msra.mxu0 0.0
        %379 = vmatprep.subr.mxu0 0.0
        %380 = vmatpush1.msra.mxu0 0.0
        %381 = vmatprep.subr.mxu0 0.0
        %382 = vmatpush1.msra.mxu0 0.0
        %383 = vmatprep.subr.mxu0 0.0
        %384 = vmatpush1.msra.mxu0 0.0
        %385 = vmatprep.subr.mxu0 0.0
        %386 = vmatpush1.msra.mxu0 0.0
        %387 = vmatprep.subr.mxu0 0.0
        %388 = vmatpush1.msra.mxu0 0.0
        %389 = vmatprep.subr.mxu0 0.0
        %390 = vmatpush1.msra.mxu0 0.0
        %391 = vmatprep.mubr.f32.mxu0 0.0
        %392 = vmatmul.mubr.f32.gmra.mrb[0].mxu0 %v322
        %v393 = vpop.f32.mrb[0].mxu0
        %v394 = vadd.f32 0.0, %v393
        %v395 = vpop.f32.mrb[0].mxu0
        %396 = vmatprep.mubr.f32.mxu0 0.0
        %397 = vmatmul.mubr.f32.gmra.mrb[0].mxu0 %v325
        %v398 = vpop.f32.mrb[0].mxu0
        %v399 = vadd.f32 0.0, %v398
        %v400 = vpop.f32.mrb[0].mxu0
        %401 = vdwg.mxu0
        %v403 = vsel %vm320, %v314, 0
        %v406 = vsel %vm320, %v315, 0
        %408 = vmatprep.subr.mxu0 0.0
        %409 = vmatpush1.msra.mxu0 %v318
        %410 = vmatprep.subr.mxu0 0.0
        %411 = vmatpush1.msra.mxu0 %v319
        %412 = vmatprep.subr.mxu0 0.0
        %413 = vmatpush1.msra.mxu0 0.0
        %414 = vmatprep.subr.mxu0 0.0
        %415 = vmatpush1.msra.mxu0 0.0
        %416 = vmatprep.subr.mxu0 0.0
        %417 = vmatpush1.msra.mxu0 0.0
        %418 = vmatprep.subr.mxu0 0.0
        %419 = vmatpush1.msra.mxu0 0.0
        %420 = vmatprep.subr.mxu0 0.0
        %421 = vmatpush1.msra.mxu0 0.0
        %422 = vmatprep.subr.mxu0 0.0
        %423 = vmatpush1.msra.mxu0 0.0
        %424 = vmatprep.subr.mxu0 0.0
        %425 = vmatpush1.msra.mxu0 0.0
        %426 = vmatprep.subr.mxu0 0.0
        %427 = vmatpush1.msra.mxu0 0.0
        %428 = vmatprep.subr.mxu0 0.0
        %429 = vmatpush1.msra.mxu0 0.0
        %430 = vmatprep.subr.mxu0 0.0
        %431 = vmatpush1.msra.mxu0 0.0
        %432 = vmatprep.subr.mxu0 0.0
        %433 = vmatpush1.msra.mxu0 0.0
        %434 = vmatprep.subr.mxu0 0.0
        %435 = vmatpush1.msra.mxu0 0.0
        %436 = vmatprep.subr.mxu0 0.0
        %437 = vmatpush1.msra.mxu0 0.0
        %438 = vmatprep.subr.mxu0 0.0
        %439 = vmatpush1.msra.mxu0 0.0
        %440 = vmatprep.subr.mxu0 0.0
        %441 = vmatpush1.msra.mxu0 0.0
        %442 = vmatprep.subr.mxu0 0.0
        %443 = vmatpush1.msra.mxu0 0.0
        %444 = vmatprep.subr.mxu0 0.0
        %445 = vmatpush1.msra.mxu0 0.0
        %446 = vmatprep.subr.mxu0 0.0
        %447 = vmatpush1.msra.mxu0 0.0
        %448 = vmatprep.subr.mxu0 0.0
        %449 = vmatpush1.msra.mxu0 0.0
        %450 = vmatprep.subr.mxu0 0.0
        %451 = vmatpush1.msra.mxu0 0.0
        %452 = vmatprep.subr.mxu0 0.0
        %453 = vmatpush1.msra.mxu0 0.0
        %454 = vmatprep.subr.mxu0 0.0
        %455 = vmatpush1.msra.mxu0 0.0
        %456 = vmatprep.subr.mxu0 0.0
        %457 = vmatpush1.msra.mxu0 0.0
        %458 = vmatprep.subr.mxu0 0.0
        %459 = vmatpush1.msra.mxu0 0.0
        %460 = vmatprep.subr.mxu0 0.0
        %461 = vmatpush1.msra.mxu0 0.0
        %462 = vmatprep.subr.mxu0 0.0
        %463 = vmatpush1.msra.mxu0 0.0
        %464 = vmatprep.subr.mxu0 0.0
        %465 = vmatpush1.msra.mxu0 0.0
        %466 = vmatprep.subr.mxu0 0.0
        %467 = vmatpush1.msra.mxu0 0.0
        %468 = vmatprep.subr.mxu0 0.0
        %469 = vmatpush1.msra.mxu0 0.0
        %470 = vmatprep.subr.mxu0 0.0
        %471 = vmatpush1.msra.mxu0 0.0
        %472 = vmatprep.mubr.f32.mxu0 0.0
        %473 = vmatmul.mubr.f32.gmra.mrb[0].mxu0 %v403
        %v474 = vpop.f32.mrb[0].mxu0
        %v475 = vadd.f32 0.0, %v474
        %v476 = vpop.f32.mrb[0].mxu0
        %477 = vmatprep.mubr.f32.mxu0 0.0
        %478 = vmatmul.mubr.f32.gmra.mrb[0].mxu0 %v406
        %v479 = vpop.f32.mrb[0].mxu0
        %v480 = vadd.f32 0.0, %v479
        %v481 = vpop.f32.mrb[0].mxu0
        %482 = vdwg.mxu0
        %v483 = vmul.f32 %v312, %v312
        %v484 = vmul.f32 %v313, %v313
        %v485 = vsel %vm320, %v483, 0.0
        %486 = vadd.xlane.f32.xlu0 %v485
        %v487 = vpop.xlane.xlu0 %486
        %v488 = vsel %vm320, %v484, 0.0
        %489 = vadd.xlane.f32.xlu0 %v488
        %v490 = vpop.xlane.xlu0 %489
        %v491 = vmul.f32 %v487, 0.125
        %v492 = vmul.f32 %v490, 0.125
        %v493 = vmul.f32 %v314, %v314
        %v494 = vmul.f32 %v315, %v315
        %v495 = vsel %vm320, %v493, 0.0
        %496 = vadd.xlane.f32.xlu0 %v495
        %v497 = vpop.xlane.xlu0 %496
        %v498 = vsel %vm320, %v494, 0.0
        %499 = vadd.xlane.f32.xlu0 %v498
        %v500 = vpop.xlane.xlu0 %499
        %v501 = vmul.f32 %v497, 0.125
        %v502 = vmul.f32 %v500, 0.125
        %v503 = vlaneseq
        %v504 = vand.u32 %v503, 127
        %vm505 = vcmp.lt.s32.totalorder %v504, 44
        %v506 = vsel %vm505, 1, 0
        %vm507 = vcmp.eq.s32.totalorder %v506, 1
        %v508 = vsel %vm507, %v394, -inf
        %v509 = vsel %vm507, %v399, -inf
        %510 = vmax.xlane.f32.xlu0 %v508
        %v511 = vpop.xlane.xlu0 %510
        %512 = vmax.xlane.f32.xlu0 %v509
        %v513 = vpop.xlane.xlu0 %512
        %v514 = vsub.f32 %v394, %v491
        %v515 = vsub.f32 %v399, %v492
        %v516 = vsub.f32 %v514, %v511
        %v517 = vsub.f32 %v515, %v513
        %v518 = vmul.f32 %v516, 1.442695
        %v519 = vpow.pop %v518
        %v520 = vmul.f32 %v517, 1.442695
        %v521 = vpow.pop %v520
        %v522 = vadd.f32 %v519, 0.0001
        %v523 = vadd.f32 %v521, 0.0001
        %v524 = vmul.f32 %v522, 0.15075567
        %v525 = vmul.f32 %v523, 0.15075567
        %v526 = vsub.f32 %v475, %v501
        %v527 = vsub.f32 %v480, %v502
        %v528 = vadd.f32 %v526, 0.0001
        %v529 = vadd.f32 %v527, 0.0001
        %v530 = vmul.f32 %v528, 1.442695
        %v531 = vpow.pop %v530
        %v532 = vmul.f32 %v529, 1.442695
        %v533 = vpow.pop %v532
        %v534 = vmul.f32 %v531, 0.15075567
        %v535 = vmul.f32 %v533, 0.15075567
        %v536 = vsel %vm507, %v534, 0.0
        %v537 = vsel %vm507, %v535, 0.0
        %v538 = vrot.slane %v536, 4
        %v539 = vadd.f32 %v536, %v538
        %v540 = vrot.slane %v539, 2
        %v541 = vadd.f32 %v539, %v540
        %v542 = vrot.slane %v541, 1
        %v543 = vadd.f32 %v541, %v542
        %v544 = vrot.slane %v537, 4
        %v545 = vadd.f32 %v537, %v544
        %v546 = vrot.slane %v545, 2
        %v547 = vadd.f32 %v545, %v546
        %v548 = vrot.slane %v547, 1
        %v549 = vadd.f32 %v547, %v548
        %v550 = vmul.f32 %v524, %v543
        %v551 = vmul.f32 %v525, %v549
        %552 = vadd.xlane.f32.xlu0 %v550
        %v553 = vpop.xlane.xlu0 %552
        %554 = vadd.xlane.f32.xlu0 %v551
        %v555 = vpop.xlane.xlu0 %554
        %v556 = vadd.f32 %v553, 1e-08
        %v557 = vadd.f32 %v555, 1e-08
        %v558 = vrcp.pop %v556
        %v559 = vrcp.pop %v557
        %v560 = vmul.f32 %v556, %v558
        %v561 = vmul.f32 %v557, %v559
        %v562 = vsub.f32 2.0, %v560
        %v563 = vsub.f32 2.0, %v561
        %v564 = vmul.f32 %v558, %v562
        %v565 = vmul.f32 %v559, %v563
        %566 = vxpose.xlu0.b32.start [1/16] %v536, 128
        %567 = vxpose.xlu0.b32.cont [2/16] 0.0, 128
        %568 = vxpose.xlu0.b32.cont [3/16] 0.0, 128
        %569 = vxpose.xlu0.b32.cont [4/16] 0.0, 128
        %570 = vxpose.xlu0.b32.cont [5/16] 0.0, 128
        %571 = vxpose.xlu0.b32.cont [6/16] 0.0, 128
        %572 = vxpose.xlu0.b32.cont [7/16] 0.0, 128
        %573 = vxpose.xlu0.b32.cont [8/16] 0.0, 128
        %574 = vxpose.xlu0.b32.cont [9/16] 0.0, 128
        %575 = vxpose.xlu0.b32.cont [10/16] 0.0, 128
        %576 = vxpose.xlu0.b32.cont [11/16] 0.0, 128
        %577 = vxpose.xlu0.b32.cont [12/16] 0.0, 128
        %578 = vxpose.xlu0.b32.cont [13/16] 0.0, 128
        %579 = vxpose.xlu0.b32.cont [14/16] 0.0, 128
        %580 = vxpose.xlu0.b32.cont [15/16] 0.0, 128
        %581 = vxpose.xlu0.b32.end [16/16] 0.0, 128
        %v582 = vpop.trf.xlu0
        %v583 = vpop.trf.xlu0
        %v584 = vpop.trf.xlu0
        %v585 = vpop.trf.xlu0
        %v586 = vpop.trf.xlu0
        %v587 = vpop.trf.xlu0
        %v588 = vpop.trf.xlu0
        %v589 = vpop.trf.xlu0
        %v590 = vpop.trf.xlu0
        %v591 = vpop.trf.xlu0
        %v592 = vpop.trf.xlu0
        %v593 = vpop.trf.xlu0
        %v594 = vpop.trf.xlu0
        %v595 = vpop.trf.xlu0
        %v596 = vpop.trf.xlu0
        %v597 = vpop.trf.xlu0
        %vm598 = vcmask 64512
        %v600 = vsel %vm598, %v582, 0
        %v603 = vsel %vm598, %v583, 0
        %v606 = vsel %vm598, %v584, 0
        %v609 = vsel %vm598, %v585, 0
        %v612 = vsel %vm598, %v586, 0
        %v615 = vsel %vm598, %v587, 0
        %v618 = vsel %vm598, %v588, 0
        %v621 = vsel %vm598, %v589, 0
        %v624 = vsel %vm598, %v590, 0
        %v627 = vsel %vm598, %v591, 0
        %v630 = vsel %vm598, %v592, 0
        %v633 = vsel %vm598, %v593, 0
        %v636 = vsel %vm598, %v594, 0
        %v639 = vsel %vm598, %v595, 0
        %v642 = vsel %vm598, %v596, 0
        %v645 = vsel %vm598, %v597, 0
        %647 = vmatprep.subr.mxu0 0.0
        %648 = vmatpush1.msra.mxu0 %v316
        %649 = vmatprep.subr.mxu0 0.0
        %650 = vmatpush1.msra.mxu0 0.0
        %651 = vmatprep.subr.mxu0 0.0
        %652 = vmatpush1.msra.mxu0 0.0
        %653 = vmatprep.subr.mxu0 0.0
        %654 = vmatpush1.msra.mxu0 0.0
        %655 = vmatprep.subr.mxu0 0.0
        %656 = vmatpush1.msra.mxu0 0.0
        %657 = vmatprep.subr.mxu0 0.0
        %658 = vmatpush1.msra.mxu0 0.0
        %659 = vmatprep.subr.mxu0 0.0
        %660 = vmatpush1.msra.mxu0 0.0
        %661 = vmatprep.subr.mxu0 0.0
        %662 = vmatpush1.msra.mxu0 0.0
        %663 = vmatprep.subr.mxu0 0.0
        %664 = vmatpush1.msra.mxu0 0.0
        %665 = vmatprep.subr.mxu0 0.0
        %666 = vmatpush1.msra.mxu0 0.0
        %667 = vmatprep.subr.mxu0 0.0
        %668 = vmatpush1.msra.mxu0 0.0
        %669 = vmatprep.subr.mxu0 0.0
        %670 = vmatpush1.msra.mxu0 0.0
        %671 = vmatprep.subr.mxu0 0.0
        %672 = vmatpush1.msra.mxu0 0.0
        %673 = vmatprep.subr.mxu0 0.0
        %674 = vmatpush1.msra.mxu0 0.0
        %675 = vmatprep.subr.mxu0 0.0
        %676 = vmatpush1.msra.mxu0 0.0
        %677 = vmatprep.subr.mxu0 0.0
        %678 = vmatpush1.msra.mxu0 0.0
        %679 = vmatprep.subr.mxu0 0.0
        %680 = vmatpush1.msra.mxu0 0.0
        %681 = vmatprep.subr.mxu0 0.0
        %682 = vmatpush1.msra.mxu0 0.0
        %683 = vmatprep.subr.mxu0 0.0
        %684 = vmatpush1.msra.mxu0 0.0
        %685 = vmatprep.subr.mxu0 0.0
        %686 = vmatpush1.msra.mxu0 0.0
        %687 = vmatprep.subr.mxu0 0.0
        %688 = vmatpush1.msra.mxu0 0.0
        %689 = vmatprep.subr.mxu0 0.0
        %690 = vmatpush1.msra.mxu0 0.0
        %691 = vmatprep.subr.mxu0 0.0
        %692 = vmatpush1.msra.mxu0 0.0
        %693 = vmatprep.subr.mxu0 0.0
        %694 = vmatpush1.msra.mxu0 0.0
        %695 = vmatprep.subr.mxu0 0.0
        %696 = vmatpush1.msra.mxu0 0.0
        %697 = vmatprep.subr.mxu0 0.0
        %698 = vmatpush1.msra.mxu0 0.0
        %699 = vmatprep.subr.mxu0 0.0
        %700 = vmatpush1.msra.mxu0 0.0
        %701 = vmatprep.subr.mxu0 0.0
        %702 = vmatpush1.msra.mxu0 0.0
        %703 = vmatprep.subr.mxu0 0.0
        %704 = vmatpush1.msra.mxu0 0.0
        %705 = vmatprep.subr.mxu0 0.0
        %706 = vmatpush1.msra.mxu0 0.0
        %707 = vmatprep.subr.mxu0 0.0
        %708 = vmatpush1.msra.mxu0 0.0
        %709 = vmatprep.subr.mxu0 0.0
        %710 = vmatpush1.msra.mxu0 0.0
        %711 = vmatprep.mubr.f32.mxu0 0.0
        %712 = vmatmul.mubr.f32.gmra.mrb[0].mxu0 %v600
        %v713 = vpop.f32.mrb[0].mxu0
        %v714 = vadd.f32 0.0, %v713
        %v715 = vpop.f32.mrb[0].mxu0
        %716 = vmatprep.mubr.f32.mxu0 0.0
        %717 = vmatmul.mubr.f32.gmra.mrb[0].mxu0 %v603
        %v718 = vpop.f32.mrb[0].mxu0
        %v719 = vadd.f32 0.0, %v718
        %v720 = vpop.f32.mrb[0].mxu0
        %721 = vmatprep.mubr.f32.mxu0 0.0
        %722 = vmatmul.mubr.f32.gmra.mrb[0].mxu0 %v606
        %v723 = vpop.f32.mrb[0].mxu0
        %v724 = vadd.f32 0.0, %v723
        %v725 = vpop.f32.mrb[0].mxu0
        %726 = vmatprep.mubr.f32.mxu0 0.0
        %727 = vmatmul.mubr.f32.gmra.mrb[0].mxu0 %v609
        %v728 = vpop.f32.mrb[0].mxu0
        %v729 = vadd.f32 0.0, %v728
        %v730 = vpop.f32.mrb[0].mxu0
        %731 = vmatprep.mubr.f32.mxu0 0.0
        %732 = vmatmul.mubr.f32.gmra.mrb[0].mxu0 %v612
        %v733 = vpop.f32.mrb[0].mxu0
        %v734 = vadd.f32 0.0, %v733
        %v735 = vpop.f32.mrb[0].mxu0
        %736 = vmatprep.mubr.f32.mxu0 0.0
        %737 = vmatmul.mubr.f32.gmra.mrb[0].mxu0 %v615
        %v738 = vpop.f32.mrb[0].mxu0
        %v739 = vadd.f32 0.0, %v738
        %v740 = vpop.f32.mrb[0].mxu0
        %741 = vmatprep.mubr.f32.mxu0 0.0
        %742 = vmatmul.mubr.f32.gmra.mrb[0].mxu0 %v618
        %v743 = vpop.f32.mrb[0].mxu0
        %v744 = vadd.f32 0.0, %v743
        %v745 = vpop.f32.mrb[0].mxu0
        %746 = vmatprep.mubr.f32.mxu0 0.0
        %747 = vmatmul.mubr.f32.gmra.mrb[0].mxu0 %v621
        %v748 = vpop.f32.mrb[0].mxu0
        %v749 = vadd.f32 0.0, %v748
        %v750 = vpop.f32.mrb[0].mxu0
        %751 = vmatprep.mubr.f32.mxu0 0.0
        %752 = vmatmul.mubr.f32.gmra.mrb[0].mxu0 %v624
        %v753 = vpop.f32.mrb[0].mxu0
        %v754 = vadd.f32 0.0, %v753
        %v755 = vpop.f32.mrb[0].mxu0
        %756 = vmatprep.mubr.f32.mxu0 0.0
        %757 = vmatmul.mubr.f32.gmra.mrb[0].mxu0 %v627
        %v758 = vpop.f32.mrb[0].mxu0
        %v759 = vadd.f32 0.0, %v758
        %v760 = vpop.f32.mrb[0].mxu0
        %761 = vmatprep.mubr.f32.mxu0 0.0
        %762 = vmatmul.mubr.f32.gmra.mrb[0].mxu0 %v630
        %v763 = vpop.f32.mrb[0].mxu0
        %v764 = vadd.f32 0.0, %v763
        %v765 = vpop.f32.mrb[0].mxu0
        %766 = vmatprep.mubr.f32.mxu0 0.0
        %767 = vmatmul.mubr.f32.gmra.mrb[0].mxu0 %v633
        %v768 = vpop.f32.mrb[0].mxu0
        %v769 = vadd.f32 0.0, %v768
        %v770 = vpop.f32.mrb[0].mxu0
        %771 = vmatprep.mubr.f32.mxu0 0.0
        %772 = vmatmul.mubr.f32.gmra.mrb[0].mxu0 %v636
        %v773 = vpop.f32.mrb[0].mxu0
        %v774 = vadd.f32 0.0, %v773
        %v775 = vpop.f32.mrb[0].mxu0
        %776 = vmatprep.mubr.f32.mxu0 0.0
        %777 = vmatmul.mubr.f32.gmra.mrb[0].mxu0 %v639
        %v778 = vpop.f32.mrb[0].mxu0
        %v779 = vadd.f32 0.0, %v778
        %v780 = vpop.f32.mrb[0].mxu0
        %781 = vmatprep.mubr.f32.mxu0 0.0
        %782 = vmatmul.mubr.f32.gmra.mrb[0].mxu0 %v642
        %v783 = vpop.f32.mrb[0].mxu0
        %v784 = vadd.f32 0.0, %v783
        %v785 = vpop.f32.mrb[0].mxu0
        %786 = vmatprep.mubr.f32.mxu0 0.0
        %787 = vmatmul.mubr.f32.gmra.mrb[0].mxu0 %v645
        %v788 = vpop.f32.mrb[0].mxu0
        %v789 = vadd.f32 0.0, %v788
        %v790 = vpop.f32.mrb[0].mxu0
        %791 = vdwg.mxu0
        %792 = vxpose.xlu0.b32.start [1/16] %v537, 128
        %793 = vxpose.xlu0.b32.cont [2/16] 0.0, 128
        %794 = vxpose.xlu0.b32.cont [3/16] 0.0, 128
        %795 = vxpose.xlu0.b32.cont [4/16] 0.0, 128
        %796 = vxpose.xlu0.b32.cont [5/16] 0.0, 128
        %797 = vxpose.xlu0.b32.cont [6/16] 0.0, 128
        %798 = vxpose.xlu0.b32.cont [7/16] 0.0, 128
        %799 = vxpose.xlu0.b32.cont [8/16] 0.0, 128
        %800 = vxpose.xlu0.b32.cont [9/16] 0.0, 128
        %801 = vxpose.xlu0.b32.cont [10/16] 0.0, 128
        %802 = vxpose.xlu0.b32.cont [11/16] 0.0, 128
        %803 = vxpose.xlu0.b32.cont [12/16] 0.0, 128
        %804 = vxpose.xlu0.b32.cont [13/16] 0.0, 128
        %805 = vxpose.xlu0.b32.cont [14/16] 0.0, 128
        %806 = vxpose.xlu0.b32.cont [15/16] 0.0, 128
        %807 = vxpose.xlu0.b32.end [16/16] 0.0, 128
        %v808 = vpop.trf.xlu0
        %v809 = vpop.trf.xlu0
        %v810 = vpop.trf.xlu0
        %v811 = vpop.trf.xlu0
        %v812 = vpop.trf.xlu0
        %v813 = vpop.trf.xlu0
        %v814 = vpop.trf.xlu0
        %v815 = vpop.trf.xlu0
        %v816 = vpop.trf.xlu0
        %v817 = vpop.trf.xlu0
        %v818 = vpop.trf.xlu0
        %v819 = vpop.trf.xlu0
        %v820 = vpop.trf.xlu0
        %v821 = vpop.trf.xlu0
        %v822 = vpop.trf.xlu0
        %v823 = vpop.trf.xlu0
        %v825 = vsel %vm598, %v808, 0
        %v828 = vsel %vm598, %v809, 0
        %v831 = vsel %vm598, %v810, 0
        %v834 = vsel %vm598, %v811, 0
        %v837 = vsel %vm598, %v812, 0
        %v840 = vsel %vm598, %v813, 0
        %v843 = vsel %vm598, %v814, 0
        %v846 = vsel %vm598, %v815, 0
        %v849 = vsel %vm598, %v816, 0
        %v852 = vsel %vm598, %v817, 0
        %v855 = vsel %vm598, %v818, 0
        %v858 = vsel %vm598, %v819, 0
        %v861 = vsel %vm598, %v820, 0
        %v864 = vsel %vm598, %v821, 0
        %v867 = vsel %vm598, %v822, 0
        %v870 = vsel %vm598, %v823, 0
        %872 = vmatprep.subr.mxu0 0.0
        %873 = vmatpush1.msra.mxu0 %v317
        %874 = vmatprep.subr.mxu0 0.0
        %875 = vmatpush1.msra.mxu0 0.0
        %876 = vmatprep.subr.mxu0 0.0
        %877 = vmatpush1.msra.mxu0 0.0
        %878 = vmatprep.subr.mxu0 0.0
        %879 = vmatpush1.msra.mxu0 0.0
        %880 = vmatprep.subr.mxu0 0.0
        %881 = vmatpush1.msra.mxu0 0.0
        %882 = vmatprep.subr.mxu0 0.0
        %883 = vmatpush1.msra.mxu0 0.0
        %884 = vmatprep.subr.mxu0 0.0
        %885 = vmatpush1.msra.mxu0 0.0
        %886 = vmatprep.subr.mxu0 0.0
        %887 = vmatpush1.msra.mxu0 0.0
        %888 = vmatprep.subr.mxu0 0.0
        %889 = vmatpush1.msra.mxu0 0.0
        %890 = vmatprep.subr.mxu0 0.0
        %891 = vmatpush1.msra.mxu0 0.0
        %892 = vmatprep.subr.mxu0 0.0
        %893 = vmatpush1.msra.mxu0 0.0
        %894 = vmatprep.subr.mxu0 0.0
        %895 = vmatpush1.msra.mxu0 0.0
        %896 = vmatprep.subr.mxu0 0.0
        %897 = vmatpush1.msra.mxu0 0.0
        %898 = vmatprep.subr.mxu0 0.0
        %899 = vmatpush1.msra.mxu0 0.0
        %900 = vmatprep.subr.mxu0 0.0
        %901 = vmatpush1.msra.mxu0 0.0
        %902 = vmatprep.subr.mxu0 0.0
        %903 = vmatpush1.msra.mxu0 0.0
        %904 = vmatprep.subr.mxu0 0.0
        %905 = vmatpush1.msra.mxu0 0.0
        %906 = vmatprep.subr.mxu0 0.0
        %907 = vmatpush1.msra.mxu0 0.0
        %908 = vmatprep.subr.mxu0 0.0
        %909 = vmatpush1.msra.mxu0 0.0
        %910 = vmatprep.subr.mxu0 0.0
        %911 = vmatpush1.msra.mxu0 0.0
        %912 = vmatprep.subr.mxu0 0.0
        %913 = vmatpush1.msra.mxu0 0.0
        %914 = vmatprep.subr.mxu0 0.0
        %915 = vmatpush1.msra.mxu0 0.0
        %916 = vmatprep.subr.mxu0 0.0
        %917 = vmatpush1.msra.mxu0 0.0
        %918 = vmatprep.subr.mxu0 0.0
        %919 = vmatpush1.msra.mxu0 0.0
        %920 = vmatprep.subr.mxu0 0.0
        %921 = vmatpush1.msra.mxu0 0.0
        %922 = vmatprep.subr.mxu0 0.0
        %923 = vmatpush1.msra.mxu0 0.0
        %924 = vmatprep.subr.mxu0 0.0
        %925 = vmatpush1.msra.mxu0 0.0
        %926 = vmatprep.subr.mxu0 0.0
        %927 = vmatpush1.msra.mxu0 0.0
        %928 = vmatprep.subr.mxu0 0.0
        %929 = vmatpush1.msra.mxu0 0.0
        %930 = vmatprep.subr.mxu0 0.0
        %931 = vmatpush1.msra.mxu0 0.0
        %932 = vmatprep.subr.mxu0 0.0
        %933 = vmatpush1.msra.mxu0 0.0
        %934 = vmatprep.subr.mxu0 0.0
        %935 = vmatpush1.msra.mxu0 0.0
        %936 = vmatprep.mubr.f32.mxu0 0.0
        %937 = vmatmul.mubr.f32.gmra.mrb[0].mxu0 %v825
        %v938 = vpop.f32.mrb[0].mxu0
        %v939 = vadd.f32 0.0, %v938
        %v940 = vpop.f32.mrb[0].mxu0
        %941 = vmatprep.mubr.f32.mxu0 0.0
        %942 = vmatmul.mubr.f32.gmra.mrb[0].mxu0 %v828
        %v943 = vpop.f32.mrb[0].mxu0
        %v944 = vadd.f32 0.0, %v943
        %v945 = vpop.f32.mrb[0].mxu0
        %946 = vmatprep.mubr.f32.mxu0 0.0
        %947 = vmatmul.mubr.f32.gmra.mrb[0].mxu0 %v831
        %v948 = vpop.f32.mrb[0].mxu0
        %v949 = vadd.f32 0.0, %v948
        %v950 = vpop.f32.mrb[0].mxu0
        %951 = vmatprep.mubr.f32.mxu0 0.0
        %952 = vmatmul.mubr.f32.gmra.mrb[0].mxu0 %v834
        %v953 = vpop.f32.mrb[0].mxu0
        %v954 = vadd.f32 0.0, %v953
        %v955 = vpop.f32.mrb[0].mxu0
        %956 = vmatprep.mubr.f32.mxu0 0.0
        %957 = vmatmul.mubr.f32.gmra.mrb[0].mxu0 %v837
        %v958 = vpop.f32.mrb[0].mxu0
        %v959 = vadd.f32 0.0, %v958
        %v960 = vpop.f32.mrb[0].mxu0
        %961 = vmatprep.mubr.f32.mxu0 0.0
        %962 = vmatmul.mubr.f32.gmra.mrb[0].mxu0 %v840
        %v963 = vpop.f32.mrb[0].mxu0
        %v964 = vadd.f32 0.0, %v963
        %v965 = vpop.f32.mrb[0].mxu0
        %966 = vmatprep.mubr.f32.mxu0 0.0
        %967 = vmatmul.mubr.f32.gmra.mrb[0].mxu0 %v843
        %v968 = vpop.f32.mrb[0].mxu0
        %v969 = vadd.f32 0.0, %v968
        %v970 = vpop.f32.mrb[0].mxu0
        %971 = vmatprep.mubr.f32.mxu0 0.0
        %972 = vmatmul.mubr.f32.gmra.mrb[0].mxu0 %v846
        %v973 = vpop.f32.mrb[0].mxu0
        %v974 = vadd.f32 0.0, %v973
        %v975 = vpop.f32.mrb[0].mxu0
        %976 = vmatprep.mubr.f32.mxu0 0.0
        %977 = vmatmul.mubr.f32.gmra.mrb[0].mxu0 %v849
        %v978 = vpop.f32.mrb[0].mxu0
        %v979 = vadd.f32 0.0, %v978
        %v980 = vpop.f32.mrb[0].mxu0
        %981 = vmatprep.mubr.f32.mxu0 0.0
        %982 = vmatmul.mubr.f32.gmra.mrb[0].mxu0 %v852
        %v983 = vpop.f32.mrb[0].mxu0
        %v984 = vadd.f32 0.0, %v983
        %v985 = vpop.f32.mrb[0].mxu0
        %986 = vmatprep.mubr.f32.mxu0 0.0
        %987 = vmatmul.mubr.f32.gmra.mrb[0].mxu0 %v855
        %v988 = vpop.f32.mrb[0].mxu0
        %v989 = vadd.f32 0.0, %v988
        %v990 = vpop.f32.mrb[0].mxu0
        %991 = vmatprep.mubr.f32.mxu0 0.0
        %992 = vmatmul.mubr.f32.gmra.mrb[0].mxu0 %v858
        %v993 = vpop.f32.mrb[0].mxu0
        %v994 = vadd.f32 0.0, %v993
        %v995 = vpop.f32.mrb[0].mxu0
        %996 = vmatprep.mubr.f32.mxu0 0.0
        %997 = vmatmul.mubr.f32.gmra.mrb[0].mxu0 %v861
        %v998 = vpop.f32.mrb[0].mxu0
        %v999 = vadd.f32 0.0, %v998
        %v1000 = vpop.f32.mrb[0].mxu0
        %1001 = vmatprep.mubr.f32.mxu0 0.0
        %1002 = vmatmul.mubr.f32.gmra.mrb[0].mxu0 %v864
        %v1003 = vpop.f32.mrb[0].mxu0
        %v1004 = vadd.f32 0.0, %v1003
        %v1005 = vpop.f32.mrb[0].mxu0
        %1006 = vmatprep.mubr.f32.mxu0 0.0
        %1007 = vmatmul.mubr.f32.gmra.mrb[0].mxu0 %v867
        %v1008 = vpop.f32.mrb[0].mxu0
        %v1009 = vadd.f32 0.0, %v1008
        %v1010 = vpop.f32.mrb[0].mxu0
        %1011 = vmatprep.mubr.f32.mxu0 0.0
        %1012 = vmatmul.mubr.f32.gmra.mrb[0].mxu0 %v870
        %v1013 = vpop.f32.mrb[0].mxu0
        %v1014 = vadd.f32 0.0, %v1013
        %v1015 = vpop.f32.mrb[0].mxu0
        %1016 = vdwg.mxu0
        %1017 = vmatprep.subr.mxu0 0.0
        %1018 = vmatpush1.msra.mxu0 %v714
        %1019 = vmatprep.subr.mxu0 0.0
        %1020 = vmatpush1.msra.mxu0 %v719
        %1021 = vmatprep.subr.mxu0 0.0
        %1022 = vmatpush1.msra.mxu0 %v724
        %1023 = vmatprep.subr.mxu0 0.0
        %1024 = vmatpush1.msra.mxu0 %v729
        %1025 = vmatprep.subr.mxu0 0.0
        %1026 = vmatpush1.msra.mxu0 %v734
        %1027 = vmatprep.subr.mxu0 0.0
        %1028 = vmatpush1.msra.mxu0 %v739
        %1029 = vmatprep.subr.mxu0 0.0
        %1030 = vmatpush1.msra.mxu0 %v744
        %1031 = vmatprep.subr.mxu0 0.0
        %1032 = vmatpush1.msra.mxu0 %v749
        %1033 = vmatprep.subr.mxu0 0.0
        %1034 = vmatpush1.msra.mxu0 %v754
        %1035 = vmatprep.subr.mxu0 0.0
        %1036 = vmatpush1.msra.mxu0 %v759
        %1037 = vmatprep.subr.mxu0 0.0
        %1038 = vmatpush1.msra.mxu0 %v764
        %1039 = vmatprep.subr.mxu0 0.0
        %1040 = vmatpush1.msra.mxu0 %v769
        %1041 = vmatprep.subr.mxu0 0.0
        %1042 = vmatpush1.msra.mxu0 %v774
        %1043 = vmatprep.subr.mxu0 0.0
        %1044 = vmatpush1.msra.mxu0 %v779
        %1045 = vmatprep.subr.mxu0 0.0
        %1046 = vmatpush1.msra.mxu0 %v784
        %1047 = vmatprep.subr.mxu0 0.0
        %1048 = vmatpush1.msra.mxu0 %v789
        %1049 = vmatprep.subr.mxu0 0.0
        %1050 = vmatpush1.msra.mxu0 0.0
        %1051 = vmatprep.subr.mxu0 0.0
        %1052 = vmatpush1.msra.mxu0 0.0
        %1053 = vmatprep.subr.mxu0 0.0
        %1054 = vmatpush1.msra.mxu0 0.0
        %1055 = vmatprep.subr.mxu0 0.0
        %1056 = vmatpush1.msra.mxu0 0.0
        %1057 = vmatprep.subr.mxu0 0.0
        %1058 = vmatpush1.msra.mxu0 0.0
        %1059 = vmatprep.subr.mxu0 0.0
        %1060 = vmatpush1.msra.mxu0 0.0
        %1061 = vmatprep.subr.mxu0 0.0
        %1062 = vmatpush1.msra.mxu0 0.0
        %1063 = vmatprep.subr.mxu0 0.0
        %1064 = vmatpush1.msra.mxu0 0.0
        %1065 = vmatprep.subr.mxu0 0.0
        %1066 = vmatpush1.msra.mxu0 0.0
        %1067 = vmatprep.subr.mxu0 0.0
        %1068 = vmatpush1.msra.mxu0 0.0
        %1069 = vmatprep.subr.mxu0 0.0
        %1070 = vmatpush1.msra.mxu0 0.0
        %1071 = vmatprep.subr.mxu0 0.0
        %1072 = vmatpush1.msra.mxu0 0.0
        %1073 = vmatprep.subr.mxu0 0.0
        %1074 = vmatpush1.msra.mxu0 0.0
        %1075 = vmatprep.subr.mxu0 0.0
        %1076 = vmatpush1.msra.mxu0 0.0
        %1077 = vmatprep.subr.mxu0 0.0
        %1078 = vmatpush1.msra.mxu0 0.0
        %1079 = vmatprep.subr.mxu0 0.0
        %1080 = vmatpush1.msra.mxu0 0.0
        %1081 = vmatprep.mubr.f32.mxu0 0.0
        %1082 = vmatmul.mubr.f32.gmra.mrb[0].mxu0 %v524
        %v1083 = vpop.f32.mrb[0].mxu0
        %v1084 = vadd.f32 0.0, %v1083
        %v1085 = vpop.f32.mrb[0].mxu0
        %1086 = vdwg.mxu0
        %1087 = vmatprep.subr.mxu0 0.0
        %1088 = vmatpush1.msra.mxu0 %v939
        %1089 = vmatprep.subr.mxu0 0.0
        %1090 = vmatpush1.msra.mxu0 %v944
        %1091 = vmatprep.subr.mxu0 0.0
        %1092 = vmatpush1.msra.mxu0 %v949
        %1093 = vmatprep.subr.mxu0 0.0
        %1094 = vmatpush1.msra.mxu0 %v954
        %1095 = vmatprep.subr.mxu0 0.0
        %1096 = vmatpush1.msra.mxu0 %v959
        %1097 = vmatprep.subr.mxu0 0.0
        %1098 = vmatpush1.msra.mxu0 %v964
        %1099 = vmatprep.subr.mxu0 0.0
        %1100 = vmatpush1.msra.mxu0 %v969
        %1101 = vmatprep.subr.mxu0 0.0
        %1102 = vmatpush1.msra.mxu0 %v974
        %1103 = vmatprep.subr.mxu0 0.0
        %1104 = vmatpush1.msra.mxu0 %v979
        %1105 = vmatprep.subr.mxu0 0.0
        %1106 = vmatpush1.msra.mxu0 %v984
        %1107 = vmatprep.subr.mxu0 0.0
        %1108 = vmatpush1.msra.mxu0 %v989
        %1109 = vmatprep.subr.mxu0 0.0
        %1110 = vmatpush1.msra.mxu0 %v994
        %1111 = vmatprep.subr.mxu0 0.0
        %1112 = vmatpush1.msra.mxu0 %v999
        %1113 = vmatprep.subr.mxu0 0.0
        %1114 = vmatpush1.msra.mxu0 %v1004
        %1115 = vmatprep.subr.mxu0 0.0
        %1116 = vmatpush1.msra.mxu0 %v1009
        %1117 = vmatprep.subr.mxu0 0.0
        %1118 = vmatpush1.msra.mxu0 %v1014
        %1119 = vmatprep.subr.mxu0 0.0
        %1120 = vmatpush1.msra.mxu0 0.0
        %1121 = vmatprep.subr.mxu0 0.0
        %1122 = vmatpush1.msra.mxu0 0.0
        %1123 = vmatprep.subr.mxu0 0.0
        %1124 = vmatpush1.msra.mxu0 0.0
        %1125 = vmatprep.subr.mxu0 0.0
        %1126 = vmatpush1.msra.mxu0 0.0
        %1127 = vmatprep.subr.mxu0 0.0
        %1128 = vmatpush1.msra.mxu0 0.0
        %1129 = vmatprep.subr.mxu0 0.0
        %1130 = vmatpush1.msra.mxu0 0.0
        %1131 = vmatprep.subr.mxu0 0.0
        %1132 = vmatpush1.msra.mxu0 0.0
        %1133 = vmatprep.subr.mxu0 0.0
        %1134 = vmatpush1.msra.mxu0 0.0
        %1135 = vmatprep.subr.mxu0 0.0
        %1136 = vmatpush1.msra.mxu0 0.0
        %1137 = vmatprep.subr.mxu0 0.0
        %1138 = vmatpush1.msra.mxu0 0.0
        %1139 = vmatprep.subr.mxu0 0.0
        %1140 = vmatpush1.msra.mxu0 0.0
        %1141 = vmatprep.subr.mxu0 0.0
        %1142 = vmatpush1.msra.mxu0 0.0
        %1143 = vmatprep.subr.mxu0 0.0
        %1144 = vmatpush1.msra.mxu0 0.0
        %1145 = vmatprep.subr.mxu0 0.0
        %1146 = vmatpush1.msra.mxu0 0.0
        %1147 = vmatprep.subr.mxu0 0.0
        %1148 = vmatpush1.msra.mxu0 0.0
        %1149 = vmatprep.subr.mxu0 0.0
        %1150 = vmatpush1.msra.mxu0 0.0
        %1151 = vmatprep.mubr.f32.mxu0 0.0
        %1152 = vmatmul.mubr.f32.gmra.mrb[0].mxu0 %v525
        %v1153 = vpop.f32.mrb[0].mxu0
        %v1154 = vadd.f32 0.0, %v1153
        %v1155 = vpop.f32.mrb[0].mxu0
        %1156 = vdwg.mxu0
        %v1157 = vmul.f32 %v1084, %v564
        %v1158 = vmul.f32 %v1154, %v565
        %1159 = vst.msk [vmem:[%s307] sm:$0xff] %vm320, %v1157
        %1160 = vst.msk [vmem:[%s307 + $0x8] sm:$0xff] %vm320, %v1158
        %s1161 = sand.u32 %s132, 1
        %s1162 = scalar_lea.sflag [#allocation4], %s1161
        %s1163 = sand.u32 %s132, 1
        %s1164 = smul.addr %s1163, 16
        %s1165 = scalar_lea.vmem [#allocation10], %s1164
        // Predicated region
        $region53: #{tpu_custom_call.1} parent=35 // pred_check
          %p1166 = pneg %p142
        $region54: #{tpu_custom_call.1} parent=35 // pred_check_branch
          %1168 = sbr.rel (%p1166) target = $region56
        $region55: #{tpu_custom_call.1} parent=35 // pred_region
          %s1169 = smul.u32 2, %s25
          %s1171 = ssub.s32 256, 256
          %1172 = vsyncadd %s1162, %s1171
          %s1173 = smul.addr %s1169, 128
          %s1174 = scalar_lea.hbm %s4, %s1173
          %s1175 = sshll.u32 %s1165, 4
          %s1176 = int_to_ptr.vmem [resolvable:$true] %s1175
          %1181 = dma.vmem_to_hbm [thread:$0]  %s1176, 256, %s1174, %s1162, 128, 128, 8
        $region56: #{tpu_custom_call.1} parent=35 // pred_fallthru
          _
      $region36: #{tpu_custom_call.1} parent=5 // pred_fallthru
        _
      %p1182 = scmp.le.s32.totalorder 2, %s20
      // Predicated region
      $region57: #{tpu_custom_call.1} parent=5 // pred_check
        %p1183 = pneg %p1182
      $region58: #{tpu_custom_call.1} parent=5 // pred_check_branch
        %1185 = sbr.rel (%p1183) target = $region60
      $region59: #{tpu_custom_call.1} parent=5 // pred_region
        %s1186 = ssub.s32 %s20, 2
        // Predicated region
        $region61: #{tpu_custom_call.1} parent=59 // pred_check
          %p1187 = pneg %p148
        $region62: #{tpu_custom_call.1} parent=59 // pred_check_branch
          %1189 = sbr.rel (%p1187) target = $region64
        $region63: #{tpu_custom_call.1} parent=59 // pred_region
          %s1190 = sand.u32 %s133, 1
          %s1191 = scalar_lea.sflag [#allocation4], %s1190
          %s1192 = sand.u32 %s133, 1
          %s1193 = smul.addr %s1192, 16
          %s1194 = scalar_lea.vmem [#allocation10], %s1193
          %1195 = dma.done %s1191, 256
        $region64: #{tpu_custom_call.1} parent=59 // pred_fallthru
          _
      $region60: #{tpu_custom_call.1} parent=5 // pred_fallthru
        _
    $region6: #{tpu_custom_call.1} parent=1 // loop_footer
      %s24 = sadd.s32 1, %s20
    $region7: #{tpu_custom_call.1} parent=1 // loop_footer_branch
      %19 = sbr.rel target = $region3
    $region8: #{tpu_custom_call.1} parent=1 // loop_exit
      _
    %1196 = vsyncpa [#allocation3], 1
    %s1197 = scalar_lea.sflag [#allocation3], 1
    %1198 = vsyncpa %s1197, 1
    %1199 = vsyncpa [#allocation6], 1
    %s1200 = scalar_lea.sflag [#allocation6], 1
    %1201 = vsyncpa %s1200, 1
    %1202 = vsyncpa [#allocation9], 1
    %1203 = vsyncpa [#allocation4], 1
    %s1204 = scalar_lea.sflag [#allocation4], 1
    %1205 = vsyncpa %s1204, 1

</llo_original>
